<compile_context>
chip_gen: v5e
topology: v5e:2x2
jax: 0.10.0
libtpu: 0.0.40
codegen_flags: <defaults>
</compile_context>

<pallas_src>
import functools

import jax
import jax.numpy as jnp
from jax.experimental import pallas as pl
from jax.experimental.pallas import tpu as pltpu


def _round_up(n, m):
    return ((n + m - 1) // m) * m


def _vmem_limit_bytes(tb, num_fields, vocab, d):
    """Generation-aware scoped-VMEM budget (clamped to fit v7x's 64 MiB)."""
    vpad = _round_up(vocab, 128)
    dpad = max(_round_up(d, 128), 128)
    fpad = max(_round_up(num_fields, 128), 128)
    est = (2 * tb * fpad * 4          # double-buffered index tile (lane-padded)
           + 2 * tb * dpad * 4        # double-buffered output tile (lane-padded)
           + vpad * dpad * 4          # resident table (single-buffered)
           + 6 * tb * vpad * 4)       # live compare/select/count temporaries
    return int(min(max(2 * est, 32 << 20), 64 << 20))


# ----------------------------- Pallas kernels -------------------------------

def _features_linear_kernel_d1(xt_ref, off_ref, emb_ref, bias_ref, o_ref):
    # Transposed layout: batch on lanes, vocab on sublanes.
    # xt_ref   : (F, TB) int32  raw per-field indices (batch tile on lanes)
    # off_ref  : (F, 1)  int32  field offsets            (VMEM resident)
    # emb_ref  : (V, 1)  f32    embedding column          (VMEM resident)
    # bias_ref : (1, 1)  f32                               (VMEM resident)
    # o_ref    : (1, TB) f32    lane-dense output slab
    num_fields, tb = xt_ref.shape
    vocab = emb_ref.shape[0]

    idx = xt_ref[...] + off_ref[...]                                   # (F, TB)
    vocab_ids = jax.lax.broadcasted_iota(jnp.int32, (vocab, tb), 0)    # vocab on sublanes
    emb_b = jnp.broadcast_to(emb_ref[...], (vocab, tb))                # hoisted once

    acc = jnp.zeros((1, tb), jnp.float32)
    for f in range(num_fields):          # static unroll; F is small
        match = idx[f:f + 1, :] == vocab_ids                           # (V, TB)
        # Fused select + sublane reduce: per-field writeback is only (1, TB).
        acc = acc + jnp.sum(jnp.where(match, emb_b, 0.0),
                            axis=0, keepdims=True)
    o_ref[...] = acc + bias_ref[...]


def _features_linear_kernel_nd(x_ref, off_ref, emb_ref, bias_ref, o_ref):
    # General output_dim: one-hot count matrix + MXU matmul.
    # x_ref    : (TB, F) int32
    # off_ref  : (1, F)  int32   (resident)
    # emb_ref  : (V, D)  f32     (resident, MXU-native (K, N) orientation)
    # bias_ref : (1, D)  f32     (resident)
    # o_ref    : (TB, D) f32
    idx = x_ref[...] + off_ref[...]                                    # (TB, F)
    tb, num_fields = idx.shape
    vocab = emb_ref.shape[0]

    vocab_ids = jax.lax.broadcasted_iota(jnp.int32, (tb, vocab), 1)
    m = (idx[:, 0:1] == vocab_ids).astype(jnp.float32)
    for f in range(1, num_fields):       # static unroll; F is small
        m = m + (idx[:, f:f + 1] == vocab_ids).astype(jnp.float32)

    # Both operands kept f32 to match the f32 reference bit-for-bit tolerance.
    # TODO(synk): on v6e/v7x, m can be cast to bf16 (small integer counts are
    #             exact) for a faster MXU pass if the tolerance change from a
    #             bf16 table is acceptable.
    out = jnp.dot(m, emb_ref[...], preferred_element_type=jnp.float32)
    o_ref[...] = out + bias_ref[...]


# ------------------------------- wrapper -------------------------------------

@functools.partial(jax.jit, static_argnames=("tb",))
def features_linear(x, offsets, emb, bias, *, tb=None):
    """x: (B, F) int; offsets: (F,) int; emb: (V, D) f32; bias: (D,) f32 -> (B, D) f32."""
    batch, num_fields = x.shape
    vocab, d = emb.shape

    # Batch-tile heuristic: single tile for tiny batches, otherwise >=2 tiles of
    # lane-aligned (multiple-of-128) rows so v7x megacore sharding has work.
    if tb is None:
        if batch <= 256:
            tb = _round_up(batch, 8)
        else:
            tb = min(512, _round_up(pl.cdiv(batch, 2), 128))
    padded = _round_up(batch, tb)

    xi = x.astype(jnp.int32)
    resident = dict(pipeline_mode=pl.Buffered(buffer_count=1))
    cparams = pltpu.CompilerParams(
        dimension_semantics=("parallel",),
        vmem_limit_bytes=_vmem_limit_bytes(tb, num_fields, vocab, d),
    )

    if d == 1:
        # Lane-dense transposed path (module default output_dim=1).
        xt = xi.T                                                      # (F, B)
        if padded != batch:
            # Padded columns read valid index 0 and are sliced off below.
            xt = jnp.pad(xt, ((0, 0), (0, padded - batch)))
        out = pl.pallas_call(
            _features_linear_kernel_d1,
            out_shape=jax.ShapeDtypeStruct((1, padded), jnp.float32),
            grid_spec=pltpu.PrefetchScalarGridSpec(
                num_scalar_prefetch=0,
                grid=(padded // tb,),
                in_specs=[
                    pl.BlockSpec((num_fields, tb), lambda i: (0, i)),  # index stream
                    pl.BlockSpec((num_fields, 1), lambda i: (0, 0), **resident),
                    pl.BlockSpec((vocab, 1), lambda i: (0, 0), **resident),
                    pl.BlockSpec((1, 1), lambda i: (0, 0), **resident),
                ],
                out_specs=pl.BlockSpec((1, tb), lambda i: (0, i)),     # lane-dense
            ),
            compiler_params=cparams,
        )(xt,
          offsets.reshape(num_fields, 1).astype(jnp.int32),
          emb.astype(jnp.float32),
          bias.reshape(1, 1).astype(jnp.float32))
        return out[0, :batch].reshape(batch, 1)

    # General output_dim path (MXU).
    if padded != batch:
        xi = jnp.pad(xi, ((0, padded - batch), (0, 0)))
    out = pl.pallas_call(
        _features_linear_kernel_nd,
        out_shape=jax.ShapeDtypeStruct((padded, d), jnp.float32),
        grid_spec=pltpu.PrefetchScalarGridSpec(
            num_scalar_prefetch=0,
            grid=(padded // tb,),
            in_specs=[
                pl.BlockSpec((tb, num_fields), lambda i: (i, 0)),
                pl.BlockSpec((1, num_fields), lambda i: (0, 0), **resident),
                pl.BlockSpec((vocab, d), lambda i: (0, 0), **resident),
                pl.BlockSpec((1, d), lambda i: (0, 0), **resident),
            ],
            out_specs=pl.BlockSpec((tb, d), lambda i: (i, 0)),
        ),
        compiler_params=cparams,
    )(xi,
      offsets.reshape(1, num_fields).astype(jnp.int32),
      emb.astype(jnp.float32),
      bias.reshape(1, d).astype(jnp.float32))
    return out[:batch]


# ------------------------- pure-JAX reference --------------------------------

def features_linear_ref(x, offsets, emb, bias):
    idx = x + offsets[None, :]
    return jnp.sum(emb[idx], axis=1) + bias


# ----------------------------------- main ------------------------------------

if __name__ == "__main__":
    key = jax.random.PRNGKey(0)
    field_dims = (8, 4, 6, 10)          # vocab = 28
    num_fields = len(field_dims)
    maxvals = jnp.array(field_dims, jnp.int32)
    offsets = jnp.concatenate(
        [jnp.zeros((1,), jnp.int32), jnp.cumsum(maxvals)[:-1].astype(jnp.int32)])
    vocab = int(sum(field_dims))

    def make_case(k, batch, output_dim):
        k_idx, k_emb, k_bias = jax.random.split(k, 3)
        x = jax.random.randint(k_idx, (batch, num_fields), 0, maxvals[None, :],
                               dtype=jnp.int32)
        emb = jax.random.normal(k_emb, (vocab, output_dim), jnp.float32)
        bias = 0.1 * jax.random.normal(k_bias, (output_dim,), jnp.float32)
        return x, emb, bias

    k1, k2, k3 = jax.random.split(key, 3)

    # Case 1: module default output_dim=1, small batch -> single lane-dense tile.
    x, emb, bias = make_case(k1, 32, 1)
    out = jax.block_until_ready(features_linear(x, offsets, emb, bias))
    ref = features_linear_ref(x, offsets, emb, bias)
    assert out.shape == (32, 1), out.shape
    assert jnp.allclose(out, ref, atol=1e-5, rtol=1e-5), "case1 mismatch vs reference"

    # Case 2: output_dim=1, larger ragged batch -> multi-tile grid + padding path.
    x, emb, bias = make_case(k2, 500, 1)
    out = jax.block_until_ready(features_linear(x, offsets, emb, bias))
    ref = features_linear_ref(x, offsets, emb, bias)
    assert out.shape == (500, 1), out.shape
    assert jnp.allclose(out, ref, atol=1e-5, rtol=1e-5), "case2 mismatch vs reference"

    # Case 3: general output_dim=8 (MXU count-matrix path).
    x, emb, bias = make_case(k3, 40, 8)
    out = jax.block_until_ready(features_linear(x, offsets, emb, bias))
    ref = features_linear_ref(x, offsets, emb, bias)
    assert out.shape == (40, 8), out.shape
    assert jnp.allclose(out, ref, atol=1e-5, rtol=1e-5), "case3 mismatch vs reference"

    print("KERNEL_OK")
</pallas_src>

<mosaic_0001>
module attributes {stable_mosaic.version = 11 : i64} {
  func.func @_features_linear_kernel_d1(%arg0: i32, %arg1: memref<4x32xi32, #tpu.memory_space<vmem>>, %arg2: memref<4x1xi32, #tpu.memory_space<vmem>>, %arg3: memref<28x1xf32, #tpu.memory_space<vmem>>, %arg4: memref<1x1xf32, #tpu.memory_space<vmem>>, %arg5: memref<1x32xf32, #tpu.memory_space<vmem>>) attributes {dimension_semantics = [#tpu.dimension_semantics<parallel>], iteration_bounds = array<i64: 1>, scalar_prefetch = 0 : i64, scratch_operands = 0 : i64, tpu.core_type = #tpu.core_type<tc>, window_params = [{transform_indices = @transform_0, window_bounds = array<i64: 4, 32>}, {pipeline_mode = #tpu.pipeline_mode<synchronous>, transform_indices = @transform_1, window_bounds = array<i64: 4, 1>}, {pipeline_mode = #tpu.pipeline_mode<synchronous>, transform_indices = @transform_2, window_bounds = array<i64: 28, 1>}, {pipeline_mode = #tpu.pipeline_mode<synchronous>, transform_indices = @transform_3, window_bounds = array<i64: 1, 1>}, {transform_indices = @transform_4, window_bounds = array<i64: 1, 32>}]} {
    %c0 = arith.constant 0 : index
    %c0_0 = arith.constant 0 : index
    %0 = vector.load %arg1[%c0, %c0_0] : memref<4x32xi32, #tpu.memory_space<vmem>>, vector<4x32xi32>
    %c0_1 = arith.constant 0 : index
    %c0_2 = arith.constant 0 : index
    %1 = vector.load %arg2[%c0_1, %c0_2] : memref<4x1xi32, #tpu.memory_space<vmem>>, vector<4x1xi32>
    %2 = vector.broadcast %1 : vector<4x1xi32> to vector<4x32xi32>
    %3 = arith.addi %0, %2 : vector<4x32xi32>
    %4 = tpu.iota {dimensions = array<i32: 0>} : vector<28x32xi32>
    %c0_3 = arith.constant 0 : index
    %c0_4 = arith.constant 0 : index
    %5 = vector.load %arg3[%c0_3, %c0_4] : memref<28x1xf32, #tpu.memory_space<vmem>>, vector<28x1xf32>
    %6 = vector.shape_cast %5 : vector<28x1xf32> to vector<28x1xf32>
    %7 = vector.broadcast %6 : vector<28x1xf32> to vector<28x32xf32>
    %cst = arith.constant 0.000000e+00 : f32
    %8 = vector.broadcast %cst : f32 to vector<1x32xf32>
    %9 = vector.extract_strided_slice %3 {offsets = [0, 0], sizes = [1, 32], strides = [1, 1]} : vector<4x32xi32> to vector<1x32xi32>
    %10 = vector.broadcast %9 : vector<1x32xi32> to vector<28x32xi32>
    %11 = arith.cmpi eq, %10, %4 : vector<28x32xi32>
    %cst_5 = arith.constant 0.000000e+00 : f32
    %12 = vector.broadcast %cst_5 : f32 to vector<28x32xf32>
    %13 = arith.select %11, %7, %12 : vector<28x32xi1>, vector<28x32xf32>
    %cst_6 = arith.constant dense<0.000000e+00> : vector<32xf32>
    %14 = vector.multi_reduction <add>, %13, %cst_6 [0] : vector<28x32xf32> to vector<32xf32>
    %15 = vector.shape_cast %14 : vector<32xf32> to vector<1x32xf32>
    %16 = arith.addf %8, %15 : vector<1x32xf32>
    %17 = vector.extract_strided_slice %3 {offsets = [1, 0], sizes = [1, 32], strides = [1, 1]} : vector<4x32xi32> to vector<1x32xi32>
    %18 = vector.broadcast %17 : vector<1x32xi32> to vector<28x32xi32>
    %19 = arith.cmpi eq, %18, %4 : vector<28x32xi32>
    %cst_7 = arith.constant 0.000000e+00 : f32
    %20 = vector.broadcast %cst_7 : f32 to vector<28x32xf32>
    %21 = arith.select %19, %7, %20 : vector<28x32xi1>, vector<28x32xf32>
    %cst_8 = arith.constant dense<0.000000e+00> : vector<32xf32>
    %22 = vector.multi_reduction <add>, %21, %cst_8 [0] : vector<28x32xf32> to vector<32xf32>
    %23 = vector.shape_cast %22 : vector<32xf32> to vector<1x32xf32>
    %24 = arith.addf %16, %23 : vector<1x32xf32>
    %25 = vector.extract_strided_slice %3 {offsets = [2, 0], sizes = [1, 32], strides = [1, 1]} : vector<4x32xi32> to vector<1x32xi32>
    %26 = vector.broadcast %25 : vector<1x32xi32> to vector<28x32xi32>
    %27 = arith.cmpi eq, %26, %4 : vector<28x32xi32>
    %cst_9 = arith.constant 0.000000e+00 : f32
    %28 = vector.broadcast %cst_9 : f32 to vector<28x32xf32>
    %29 = arith.select %27, %7, %28 : vector<28x32xi1>, vector<28x32xf32>
    %cst_10 = arith.constant dense<0.000000e+00> : vector<32xf32>
    %30 = vector.multi_reduction <add>, %29, %cst_10 [0] : vector<28x32xf32> to vector<32xf32>
    %31 = vector.shape_cast %30 : vector<32xf32> to vector<1x32xf32>
    %32 = arith.addf %24, %31 : vector<1x32xf32>
    %33 = vector.extract_strided_slice %3 {offsets = [3, 0], sizes = [1, 32], strides = [1, 1]} : vector<4x32xi32> to vector<1x32xi32>
    %34 = vector.broadcast %33 : vector<1x32xi32> to vector<28x32xi32>
    %35 = arith.cmpi eq, %34, %4 : vector<28x32xi32>
    %cst_11 = arith.constant 0.000000e+00 : f32
    %36 = vector.broadcast %cst_11 : f32 to vector<28x32xf32>
    %37 = arith.select %35, %7, %36 : vector<28x32xi1>, vector<28x32xf32>
    %cst_12 = arith.constant dense<0.000000e+00> : vector<32xf32>
    %38 = vector.multi_reduction <add>, %37, %cst_12 [0] : vector<28x32xf32> to vector<32xf32>
    %39 = vector.shape_cast %38 : vector<32xf32> to vector<1x32xf32>
    %40 = arith.addf %32, %39 : vector<1x32xf32>
    %c0_13 = arith.constant 0 : index
    %c0_14 = arith.constant 0 : index
    %41 = vector.load %arg4[%c0_13, %c0_14] : memref<1x1xf32, #tpu.memory_space<vmem>>, vector<1x1xf32>
    %42 = vector.broadcast %41 : vector<1x1xf32> to vector<1x32xf32>
    %43 = arith.addf %40, %42 : vector<1x32xf32>
    %c0_15 = arith.constant 0 : index
    %c0_16 = arith.constant 0 : index
    %44 = vector.load %arg5[%c0_15, %c0_16] : memref<1x32xf32, #tpu.memory_space<vmem>>, vector<1x32xf32>
    tpu.vector_store %arg5[%c0_15, %c0_16], %43 {strides = array<i32>} : memref<1x32xf32, #tpu.memory_space<vmem>>, vector<1x32xf32>,
    return
  }
  func.func @transform_0(%arg0: i32) -> (i32, i32) {
    %c0_i32 = arith.constant 0 : i32
    %c0_i32_0 = arith.constant 0 : i32
    return %c0_i32, %arg0 : i32, i32
  }
  func.func @transform_1(%arg0: i32) -> (i32, i32) {
    %c0_i32 = arith.constant 0 : i32
    %c0_i32_0 = arith.constant 0 : i32
    %c0_i32_1 = arith.constant 0 : i32
    return %c0_i32, %c0_i32_0 : i32, i32
  }
  func.func @transform_2(%arg0: i32) -> (i32, i32) {
    %c0_i32 = arith.constant 0 : i32
    %c0_i32_0 = arith.constant 0 : i32
    %c0_i32_1 = arith.constant 0 : i32
    return %c0_i32, %c0_i32_0 : i32, i32
  }
  func.func @transform_3(%arg0: i32) -> (i32, i32) {
    %c0_i32 = arith.constant 0 : i32
    %c0_i32_0 = arith.constant 0 : i32
    %c0_i32_1 = arith.constant 0 : i32
    return %c0_i32, %c0_i32_0 : i32, i32
  }
  func.func @transform_4(%arg0: i32) -> (i32, i32) {
    %c0_i32 = arith.constant 0 : i32
    %c0_i32_0 = arith.constant 0 : i32
    return %c0_i32, %arg0 : i32, i32
  }
}

</mosaic_0001>

<llo_original>
// kernel: features_linear.1
$region0: #{features_linear.1}
  #allocation0 [shape = 'u32[]', space=smem, size = 0x4, offset = 0x4, fixed_abs, tag = 'smem constant byte address 0x4 - core index']
  #allocation1 [shape = 'u32[72,128]{1,0:T(1,128)}', space=vmem, size = 0x9000, scoped, tag = 'internal scratch']
  #allocation2 [shape = 'f32[1,1]{1,0:T(1,128)S(1)}', space=vmem, size = 0x200, scoped, tag = 'scoped memory for features_linear.1']
  %s0 = inlined_call_operand.vmem [shape: s32[4,32], index: 0, kind: input, shape index: {}]
  %s1 = inlined_call_operand.vmem [shape: s32[4,1], index: 1, kind: input, shape index: {}]
  %s2 = inlined_call_operand.vmem [shape: f32[28,1], index: 2, kind: input, shape index: {}]
  %s3 = inlined_call_operand.<no memory space> [shape: f32[1,1], index: 3, kind: input, shape index: {}]
  %s4 = inlined_call_operand.hbm [shape: f32[1,32], index: 4, kind: output, shape index: {}]
  %s5 = sld [smem:[#allocation0]]
  $region26: #{features_linear.1} parent=0
    _
  %s7 = ssub.s32 1, %s5
  %s8 = scalar_select 0, %s7, %s5
  %v9 = vstv %s3
  %10 = vst [vmem:[#allocation2] sm:$0x1] %v9
  $region1: #{features_linear.1} parent=0
    #allocation3 [shape = 'u8[512]{0}', space=vmem, size = 0x400, scoped, tag = 'output window, operand 0, single buffered']
    #allocation4 [shape = 's32[1]{0}', space=sflag, size = 0x4, scoped, tag = 'scoped memory for features_linear.1']
    %11 = vsyncpa [#allocation4], 0
    // Predicated region
    $region2: #{features_linear.1} parent=1 // pred_check
      _
    $region3: #{features_linear.1} parent=1 // pred_check_branch
      %13 = sbr.rel (0) target = $region5
    $region4: #{features_linear.1} parent=1 // pred_region
      _
    $region5: #{features_linear.1} parent=1 // pred_fallthru
      _
    // Predicated region
    $region6: #{features_linear.1} parent=1 // pred_check
      _
    $region7: #{features_linear.1} parent=1 // pred_check_branch
      %15 = sbr.rel (0) target = $region9
    $region8: #{features_linear.1} parent=1 // pred_region
      _
    $region9: #{features_linear.1} parent=1 // pred_fallthru
      _
    // Predicated region
    $region10: #{features_linear.1} parent=1 // pred_check
      _
    $region11: #{features_linear.1} parent=1 // pred_check_branch
      %17 = sbr.rel (0) target = $region13
    $region12: #{features_linear.1} parent=1 // pred_region
      _
    $region13: #{features_linear.1} parent=1 // pred_fallthru
      _
    // Predicated region
    $region14: #{features_linear.1} parent=1 // pred_check
      _
    $region15: #{features_linear.1} parent=1 // pred_check_branch
      %19 = sbr.rel (0) target = $region17
    $region16: #{features_linear.1} parent=1 // pred_region
      _
    $region17: #{features_linear.1} parent=1 // pred_fallthru
      _
    %v20 = vld [vmem:[%s0] sm:$0xf]
    %v21 = vld [vmem:[%s1] sm:$0xf]
    %22 = vset.pattern.permute.xlu0 0
    %23 = vperm.xlu0 %22, %v21
    %v24 = vpop.permute.xlu0 %23
    %v25 = vadd.s32 %v20, %v24
    %v26 = vlaneseq
    %v27 = vshrl.u32 %v26, 7
    %v28 = vadd.s32 %v27, 8
    %v29 = vadd.s32 %v27, 16
    %v30 = vadd.s32 %v27, 24
    %v31 = vld [vmem:[%s2] sm:$0xff]
    %v32 = vld [vmem:[%s2 + $0x8] sm:$0xff]
    %v33 = vld [vmem:[%s2 + $0x10] sm:$0xff]
    %v34 = vld [vmem:[%s2 + $0x18] sm:$0xf]
    %36 = vset.pattern.permute.xlu0 0
    %37 = vperm.xlu0 %36, %v31
    %v38 = vpop.permute.xlu0 %37
    %41 = vset.pattern.permute.xlu0 0
    %42 = vperm.xlu0 %41, %v32
    %v43 = vpop.permute.xlu0 %42
    %46 = vset.pattern.permute.xlu0 0
    %47 = vperm.xlu0 %46, %v33
    %v48 = vpop.permute.xlu0 %47
    %51 = vset.pattern.permute.xlu0 0
    %52 = vperm.xlu0 %51, %v34
    %v53 = vpop.permute.xlu0 %52
    %v55 = vperm.slane %v25, 0
    %vm56 = vcmp.eq.s32.totalorder %v55, %v27
    %vm57 = vcmp.eq.s32.totalorder %v55, %v28
    %vm58 = vcmp.eq.s32.totalorder %v55, %v29
    %vm59 = vcmp.eq.s32.totalorder %v55, %v30
    %v60 = vsel %vm56, %v38, 0.0
    %v61 = vsel %vm57, %v43, 0.0
    %v62 = vsel %vm58, %v48, 0.0
    %v63 = vsel %vm59, %v53, 0.0
    %vm64 = vcmask 261120
    %v65 = vsel %vm64, %v60, 0.0
    %v66 = vsel %vm64, %v61, 0.0
    %v67 = vadd.f32 %v65, %v66
    %v68 = vsel %vm64, %v62, 0.0
    %v69 = vadd.f32 %v67, %v68
    %vm70 = vcmask 257024
    %v71 = vsel %vm70, %v63, 0.0
    %v72 = vadd.f32 %v69, %v71
    %v73 = vrot.slane %v72, 4
    %v74 = vadd.f32 %v72, %v73
    %v75 = vrot.slane %v74, 2
    %v76 = vadd.f32 %v74, %v75
    %v77 = vrot.slane %v76, 1
    %v78 = vadd.f32 %v76, %v77
    %v79 = vadd.f32 %v78, 0.0
    %v80 = vperm.slane %v25, 1
    %vm81 = vcmp.eq.s32.totalorder %v80, %v27
    %vm82 = vcmp.eq.s32.totalorder %v80, %v28
    %vm83 = vcmp.eq.s32.totalorder %v80, %v29
    %vm84 = vcmp.eq.s32.totalorder %v80, %v30
    %v85 = vsel %vm81, %v38, 0.0
    %v86 = vsel %vm82, %v43, 0.0
    %v87 = vsel %vm83, %v48, 0.0
    %v88 = vsel %vm84, %v53, 0.0
    %v89 = vsel %vm64, %v85, 0.0
    %v90 = vsel %vm64, %v86, 0.0
    %v91 = vadd.f32 %v89, %v90
    %v92 = vsel %vm64, %v87, 0.0
    %v93 = vadd.f32 %v91, %v92
    %v94 = vsel %vm70, %v88, 0.0
    %v95 = vadd.f32 %v93, %v94
    %v96 = vrot.slane %v95, 4
    %v97 = vadd.f32 %v95, %v96
    %v98 = vrot.slane %v97, 2
    %v99 = vadd.f32 %v97, %v98
    %v100 = vrot.slane %v99, 1
    %v101 = vadd.f32 %v99, %v100
    %v102 = vadd.f32 %v79, %v101
    %v103 = vperm.slane %v25, 2
    %vm104 = vcmp.eq.s32.totalorder %v103, %v27
    %vm105 = vcmp.eq.s32.totalorder %v103, %v28
    %vm106 = vcmp.eq.s32.totalorder %v103, %v29
    %vm107 = vcmp.eq.s32.totalorder %v103, %v30
    %v108 = vsel %vm104, %v38, 0.0
    %v109 = vsel %vm105, %v43, 0.0
    %v110 = vsel %vm106, %v48, 0.0
    %v111 = vsel %vm107, %v53, 0.0
    %v112 = vsel %vm64, %v108, 0.0
    %v113 = vsel %vm64, %v109, 0.0
    %v114 = vadd.f32 %v112, %v113
    %v115 = vsel %vm64, %v110, 0.0
    %v116 = vadd.f32 %v114, %v115
    %v117 = vsel %vm70, %v111, 0.0
    %v118 = vadd.f32 %v116, %v117
    %v119 = vrot.slane %v118, 4
    %v120 = vadd.f32 %v118, %v119
    %v121 = vrot.slane %v120, 2
    %v122 = vadd.f32 %v120, %v121
    %v123 = vrot.slane %v122, 1
    %v124 = vadd.f32 %v122, %v123
    %v125 = vadd.f32 %v102, %v124
    %v126 = vperm.slane %v25, 3
    %vm127 = vcmp.eq.s32.totalorder %v126, %v27
    %vm128 = vcmp.eq.s32.totalorder %v126, %v28
    %vm129 = vcmp.eq.s32.totalorder %v126, %v29
    %vm130 = vcmp.eq.s32.totalorder %v126, %v30
    %v131 = vsel %vm127, %v38, 0.0
    %v132 = vsel %vm128, %v43, 0.0
    %v133 = vsel %vm129, %v48, 0.0
    %v134 = vsel %vm130, %v53, 0.0
    %v135 = vsel %vm64, %v131, 0.0
    %v136 = vsel %vm64, %v132, 0.0
    %v137 = vadd.f32 %v135, %v136
    %v138 = vsel %vm64, %v133, 0.0
    %v139 = vadd.f32 %v137, %v138
    %v140 = vsel %vm70, %v134, 0.0
    %v141 = vadd.f32 %v139, %v140
    %v142 = vrot.slane %v141, 4
    %v143 = vadd.f32 %v141, %v142
    %v144 = vrot.slane %v143, 2
    %v145 = vadd.f32 %v143, %v144
    %v146 = vrot.slane %v145, 1
    %v147 = vadd.f32 %v145, %v146
    %v148 = vadd.f32 %v125, %v147
    %v149 = vld [vmem:[#allocation2] sm:$0x1]
    %151 = vset.pattern.permute.xlu0 0
    %152 = vperm.xlu0 %151, %v149
    %v153 = vpop.permute.xlu0 %152
    %v155 = vperm.slane %v153, 0
    %v156 = vadd.f32 %v148, %v155
    %vm157 = vcmask 253952
    %158 = vst.msk [vmem:[#allocation3] sm:$0x1] %vm157, %v156
    // Predicated region
    $region18: #{features_linear.1} parent=1 // pred_check
      _
    $region19: #{features_linear.1} parent=1 // pred_check_branch
      %160 = sbr.rel (0) target = $region21
    $region20: #{features_linear.1} parent=1 // pred_region
      %162 = vsyncadd [#allocation4], 0
      %s164 = sshll.u32 [#allocation3], 4
      %s165 = int_to_ptr.vmem [resolvable:$true] %s164
      %s166 = sshll.u32 %s4, 4
      %s167 = int_to_ptr.hbm [resolvable:$true] %s166
      %169 = dma.vmem_to_hbm [thread:$0]  %s165, 16, %s167, [#allocation4]
    $region21: #{features_linear.1} parent=1 // pred_fallthru
      _
    // Predicated region
    $region22: #{features_linear.1} parent=1 // pred_check
      _
    $region23: #{features_linear.1} parent=1 // pred_check_branch
      %171 = sbr.rel (0) target = $region25
    $region24: #{features_linear.1} parent=1 // pred_region
      %173 = dma.done [#allocation4], 16
    $region25: #{features_linear.1} parent=1 // pred_fallthru
      _
    %174 = vsyncpa [#allocation4], 1

</llo_original>
